<compile_context>
chip_gen: v6e
topology: v6e:2x2x1
jax: 0.10.0
libtpu: 0.0.40
codegen_flags: <defaults>
</compile_context>

<pallas_src>
import functools

import jax
import jax.numpy as jnp
from jax.experimental import pallas as pl
from jax.experimental.pallas import tpu as pltpu


def _nt_xent_kernel(zq_ref, zk_ref, loss_ref, *, temperature, half_n):
    """One row-tile of the N x N similarity matrix.

    zq_ref:   (TQ, D) rows of z handled by this grid step.
    zk_ref:   (N, D)  all of z (resident in VMEM, constant index_map).
    loss_ref: (TQ, 1) per-sample NT-Xent loss for these rows.
    """
    i = pl.program_id(0)
    tq = zq_ref.shape[0]
    n = zk_ref.shape[0]

    q = zq_ref[...].astype(jnp.float32)
    k = zk_ref[...].astype(jnp.float32)

    # Cosine normalization (eps clamp mirrors torch.nn.CosineSimilarity).
    q_norm = jnp.sqrt(jnp.sum(q * q, axis=-1, keepdims=True))
    k_norm = jnp.sqrt(jnp.sum(k * k, axis=-1, keepdims=True))
    qn = q / jnp.maximum(q_norm, 1e-8)
    kn = k / jnp.maximum(k_norm, 1e-8)

    # sim[r, c] = cos(z_r, z_c) / temperature   (contract over D, rhs transposed)
    sim = jax.lax.dot_general(
        qn, kn, (((1,), (1,)), ((), ())),
        preferred_element_type=jnp.float32,
    )
    sim = sim / temperature

    row = i * tq + jax.lax.broadcasted_iota(jnp.int32, (tq, n), 0)
    col = jax.lax.broadcasted_iota(jnp.int32, (tq, n), 1)

    # Positive-pair column: (row + half_n) mod N.
    pos_col = jnp.where(row < half_n, row + half_n, row - half_n)
    pos = jnp.sum(jnp.where(col == pos_col, sim, 0.0), axis=-1, keepdims=True)

    # Logits for row r are {sim[r, c] : c != r}; the positive is among them,
    # only the self-similarity on the diagonal is excluded.
    sim_masked = jnp.where(col == row, jnp.float32(-1e30), sim)
    m = jnp.max(sim_masked, axis=-1, keepdims=True)
    lse = m + jnp.log(jnp.sum(jnp.exp(sim_masked - m), axis=-1, keepdims=True))

    # CrossEntropy with label 0: logsumexp(logits) - positive.
    loss_ref[...] = lse - pos


def _pick_row_tile(n):
    for t in (512, 256, 128, 64, 32, 16, 8):
        if n % t == 0:
            return t
    return n  # single full-extent block (always a legal block shape)


def nt_xent_loss(z, batch_size, temperature, world_size=1):
    """Equivalent of NT_Xent(batch_size, temperature, world_size).forward(z).

    z: (2 * batch_size * world_size, D) embeddings. If world_size > 1, z must
    already contain the embeddings gathered from all processes.
    """
    # TODO(synk): GatherLayer (torch.distributed all_gather) has no
    # single-device Pallas equivalent; z is assumed to be pre-gathered.
    half_n = batch_size * world_size
    n = 2 * half_n
    assert z.shape[0] == n, (z.shape, n)
    d = z.shape[1]

    tq = _pick_row_tile(n)
    grid = (n // tq,)

    kernel = functools.partial(
        _nt_xent_kernel, temperature=float(temperature), half_n=half_n)

    per_sample = pl.pallas_call(
        kernel,
        out_shape=jax.ShapeDtypeStruct((n, 1), jnp.float32),
        grid_spec=pltpu.PrefetchScalarGridSpec(
            num_scalar_prefetch=0,
            grid=grid,
            in_specs=[
                pl.BlockSpec((tq, d), lambda i: (i, 0)),  # row tile of z
                pl.BlockSpec((n, d), lambda i: (0, 0)),   # all of z (resident)
            ],
            out_specs=pl.BlockSpec((tq, 1), lambda i: (i, 0)),
        ),
        compiler_params=pltpu.CompilerParams(
            dimension_semantics=("parallel",),
        ),
    )(z, z)

    # nn.CrossEntropyLoss(reduction='sum') / N
    return jnp.sum(per_sample) / n


def _reference(z, batch_size, temperature, world_size=1):
    half_n = batch_size * world_size
    n = 2 * half_n
    zf = z.astype(jnp.float32)
    zn = zf / jnp.maximum(
        jnp.sqrt(jnp.sum(zf * zf, axis=1, keepdims=True)), 1e-8)
    sim = jnp.einsum("id,jd->ij", zn, zn,
                     precision=jax.lax.Precision.HIGHEST) / temperature
    pos = jnp.concatenate(
        [jnp.diag(sim, k=half_n), jnp.diag(sim, k=-half_n)])
    off_diag = jnp.where(jnp.eye(n, dtype=bool), -jnp.inf, sim)
    lse = jax.scipy.special.logsumexp(off_diag, axis=1)
    return jnp.sum(lse - pos) / n


if __name__ == "__main__":
    batch_size = 8
    temperature = 0.5
    world_size = 1
    hidden = 32

    key = jax.random.PRNGKey(0)
    z = jax.random.normal(
        key, (2 * batch_size * world_size, hidden), dtype=jnp.float32)

    loss = nt_xent_loss(z, batch_size, temperature, world_size)
    jax.block_until_ready(loss)

    ref = _reference(z, batch_size, temperature, world_size)
    # Loose tolerance only to absorb MXU f32-matmul pass differences; any
    # formula error (mask / positive index / missing 1/N) is >> 3e-2 off.
    assert jnp.allclose(loss, ref, atol=3e-2, rtol=3e-2), (loss, ref)

    print("KERNEL_OK")
</pallas_src>

<mosaic_0001>
module attributes {stable_mosaic.version = 11 : i64} {
  func.func @_nt_xent_kernel(%arg0: i32, %arg1: memref<16x32xf32, #tpu.memory_space<vmem>>, %arg2: memref<16x32xf32, #tpu.memory_space<vmem>>, %arg3: memref<16x1xf32, #tpu.memory_space<vmem>>) attributes {dimension_semantics = [#tpu.dimension_semantics<parallel>], iteration_bounds = array<i64: 1>, scalar_prefetch = 0 : i64, scratch_operands = 0 : i64, tpu.core_type = #tpu.core_type<tc>, window_params = [{transform_indices = @transform_0, window_bounds = array<i64: 16, 32>}, {pipeline_mode = #tpu.pipeline_mode<synchronous>, transform_indices = @transform_1, window_bounds = array<i64: 16, 32>}, {transform_indices = @transform_2, window_bounds = array<i64: 16, 1>}]} {
    %c0 = arith.constant 0 : index
    %c0_0 = arith.constant 0 : index
    %0 = vector.load %arg1[%c0, %c0_0] : memref<16x32xf32, #tpu.memory_space<vmem>>, vector<16x32xf32>
    %c0_1 = arith.constant 0 : index
    %c0_2 = arith.constant 0 : index
    %1 = vector.load %arg2[%c0_1, %c0_2] : memref<16x32xf32, #tpu.memory_space<vmem>>, vector<16x32xf32>
    %2 = arith.mulf %0, %0 : vector<16x32xf32>
    %cst = arith.constant dense<0.000000e+00> : vector<16xf32>
    %3 = vector.multi_reduction <add>, %2, %cst [1] : vector<16x32xf32> to vector<16xf32>
    %4 = vector.shape_cast %3 : vector<16xf32> to vector<16x1xf32>
    %5 = math.sqrt %4 : vector<16x1xf32>
    %6 = arith.mulf %1, %1 : vector<16x32xf32>
    %cst_3 = arith.constant dense<0.000000e+00> : vector<16xf32>
    %7 = vector.multi_reduction <add>, %6, %cst_3 [1] : vector<16x32xf32> to vector<16xf32>
    %8 = vector.shape_cast %7 : vector<16xf32> to vector<16x1xf32>
    %9 = math.sqrt %8 : vector<16x1xf32>
    %cst_4 = arith.constant 9.99999993E-9 : f32
    %10 = vector.broadcast %cst_4 : f32 to vector<16x1xf32>
    %11 = arith.maximumf %5, %10 : vector<16x1xf32>
    %12 = vector.broadcast %11 : vector<16x1xf32> to vector<16x32xf32>
    %13 = arith.divf %0, %12 : vector<16x32xf32>
    %cst_5 = arith.constant 9.99999993E-9 : f32
    %14 = vector.broadcast %cst_5 : f32 to vector<16x1xf32>
    %15 = arith.maximumf %9, %14 : vector<16x1xf32>
    %16 = vector.broadcast %15 : vector<16x1xf32> to vector<16x32xf32>
    %17 = arith.divf %1, %16 : vector<16x32xf32>
    %cst_6 = arith.constant dense<0.000000e+00> : vector<16x16xf32>
    %18 = tpu.matmul %13, %17, %cst_6 {dimension_numbers = #tpu.dot_dimension_numbers<[1], [1], [0], [0], [0, 0, 1, 0], [], []>} : vector<16x32xf32>, vector<16x32xf32>, vector<16x16xf32> -> vector<16x16xf32>
    %cst_7 = arith.constant 5.000000e-01 : f32
    %19 = vector.broadcast %cst_7 : f32 to vector<16x16xf32>
    %20 = arith.divf %18, %19 : vector<16x16xf32>
    %c16_i32 = arith.constant 16 : i32
    %21 = arith.muli %arg0, %c16_i32 : i32
    %22 = tpu.iota {dimensions = array<i32: 0>} : vector<16x16xi32>
    %23 = vector.broadcast %21 : i32 to vector<16x16xi32>
    %24 = arith.addi %23, %22 : vector<16x16xi32>
    %25 = tpu.iota {dimensions = array<i32: 1>} : vector<16x16xi32>
    %c8_i32 = arith.constant 8 : i32
    %26 = vector.broadcast %c8_i32 : i32 to vector<16x16xi32>
    %27 = arith.cmpi slt, %24, %26 : vector<16x16xi32>
    %c8_i32_8 = arith.constant 8 : i32
    %28 = vector.broadcast %c8_i32_8 : i32 to vector<16x16xi32>
    %29 = arith.addi %24, %28 : vector<16x16xi32>
    %c8_i32_9 = arith.constant 8 : i32
    %30 = vector.broadcast %c8_i32_9 : i32 to vector<16x16xi32>
    %31 = arith.subi %24, %30 : vector<16x16xi32>
    %32 = arith.select %27, %29, %31 : vector<16x16xi1>, vector<16x16xi32>
    %33 = arith.cmpi eq, %25, %32 : vector<16x16xi32>
    %cst_10 = arith.constant 0.000000e+00 : f32
    %34 = vector.broadcast %cst_10 : f32 to vector<16x16xf32>
    %35 = arith.select %33, %20, %34 : vector<16x16xi1>, vector<16x16xf32>
    %cst_11 = arith.constant dense<0.000000e+00> : vector<16xf32>
    %36 = vector.multi_reduction <add>, %35, %cst_11 [1] : vector<16x16xf32> to vector<16xf32>
    %37 = vector.shape_cast %36 : vector<16xf32> to vector<16x1xf32>
    %38 = arith.cmpi eq, %25, %24 : vector<16x16xi32>
    %cst_12 = arith.constant -1.000000e+30 : f32
    %39 = vector.broadcast %cst_12 : f32 to vector<16x16xf32>
    %40 = arith.select %38, %39, %20 : vector<16x16xi1>, vector<16x16xf32>
    %cst_13 = arith.constant dense<0xFF800000> : vector<16xf32>
    %41 = vector.multi_reduction <maximumf>, %40, %cst_13 [1] : vector<16x16xf32> to vector<16xf32>
    %42 = vector.shape_cast %41 : vector<16xf32> to vector<16x1xf32>
    %43 = vector.broadcast %42 : vector<16x1xf32> to vector<16x16xf32>
    %44 = arith.subf %40, %43 : vector<16x16xf32>
    %45 = math.exp %44 : vector<16x16xf32>
    %cst_14 = arith.constant dense<0.000000e+00> : vector<16xf32>
    %46 = vector.multi_reduction <add>, %45, %cst_14 [1] : vector<16x16xf32> to vector<16xf32>
    %47 = vector.shape_cast %46 : vector<16xf32> to vector<16x1xf32>
    %48 = math.log %47 : vector<16x1xf32>
    %49 = arith.addf %42, %48 : vector<16x1xf32>
    %50 = arith.subf %49, %37 : vector<16x1xf32>
    %c0_15 = arith.constant 0 : index
    %c0_16 = arith.constant 0 : index
    %51 = vector.load %arg3[%c0_15, %c0_16] : memref<16x1xf32, #tpu.memory_space<vmem>>, vector<16x1xf32>
    tpu.vector_store %arg3[%c0_15, %c0_16], %50 {strides = array<i32>} : memref<16x1xf32, #tpu.memory_space<vmem>>, vector<16x1xf32>,
    return
  }
  func.func @transform_0(%arg0: i32) -> (i32, i32) {
    %c0_i32 = arith.constant 0 : i32
    %c0_i32_0 = arith.constant 0 : i32
    return %arg0, %c0_i32 : i32, i32
  }
  func.func @transform_1(%arg0: i32) -> (i32, i32) {
    %c0_i32 = arith.constant 0 : i32
    %c0_i32_0 = arith.constant 0 : i32
    %c0_i32_1 = arith.constant 0 : i32
    return %c0_i32, %c0_i32_0 : i32, i32
  }
  func.func @transform_2(%arg0: i32) -> (i32, i32) {
    %c0_i32 = arith.constant 0 : i32
    %c0_i32_0 = arith.constant 0 : i32
    return %arg0, %c0_i32 : i32, i32
  }
}

</mosaic_0001>

<llo_original>
// kernel: tpu_custom_call.1
$region0: #{tpu_custom_call.1}
  #allocation0 [shape = 'u32[]', space=smem, size = 0x4, offset = 0x4, fixed_abs, tag = 'smem constant byte address 0x4 - core index']
  #allocation1 [shape = 'u32[144,128]{1,0:T(1,128)}', space=vmem, size = 0x12000, scoped, tag = 'internal scratch']
  %s0 = inlined_call_operand.hbm [shape: f32[16,32], index: 0, kind: input, shape index: {}]
  %s1 = inlined_call_operand.hbm [shape: f32[16,32], index: 1, kind: input, shape index: {}]
  %s2 = inlined_call_operand.vmem [shape: f32[16,1], index: 2, kind: output, shape index: {}]
  %s3 = sld [smem:[#allocation0]]
  $region26: #{tpu_custom_call.1} parent=0
    _
  %s5 = ssub.s32 1, %s3
  %s6 = scalar_select 0, %s5, %s3
  $region1: #{tpu_custom_call.1} parent=0
    #allocation2 [shape = 'u8[8192]{0}', space=vmem, size = 0x2000, scoped, tag = 'input window, operand 0, single buffered']
    #allocation3 [shape = 's32[1]{0}', space=sflag, size = 0x4, scoped, tag = 'scoped memory for tpu_custom_call.1']
    #allocation4 [shape = 'u8[8192]{0}', space=vmem, size = 0x2000, scoped, tag = 'input window, operand 1, single buffered']
    #allocation5 [shape = 's32[1]{0}', space=sflag, size = 0x4, scoped, tag = 'scoped memory for tpu_custom_call.1']
    %7 = vsyncpa [#allocation3], 0
    %8 = vsyncpa [#allocation5], 0
    // Predicated region
    $region2: #{tpu_custom_call.1} parent=1 // pred_check
      _
    $region3: #{tpu_custom_call.1} parent=1 // pred_check_branch
      %10 = sbr.rel (0) target = $region5
    $region4: #{tpu_custom_call.1} parent=1 // pred_region
      %s12 = ssub.s32 256, 256
      %13 = vsyncadd [#allocation3], %s12
      %s14 = sshll.u32 [#allocation2], 4
      %s15 = int_to_ptr.vmem [resolvable:$true] %s14
      %20 = dma.hbm_to_vmem [thread:$0]  %s0, 256, %s15, [#allocation3], 128, 128, 8
    $region5: #{tpu_custom_call.1} parent=1 // pred_fallthru
      _
    // Predicated region
    $region6: #{tpu_custom_call.1} parent=1 // pred_check
      _
    $region7: #{tpu_custom_call.1} parent=1 // pred_check_branch
      %22 = sbr.rel (0) target = $region9
    $region8: #{tpu_custom_call.1} parent=1 // pred_region
      %s24 = ssub.s32 256, 256
      %25 = vsyncadd [#allocation5], %s24
      %s26 = sshll.u32 [#allocation4], 4
      %s27 = int_to_ptr.vmem [resolvable:$true] %s26
      %32 = dma.hbm_to_vmem [thread:$0]  %s1, 256, %s27, [#allocation5], 128, 128, 8
    $region9: #{tpu_custom_call.1} parent=1 // pred_fallthru
      _
    // Predicated region
    $region10: #{tpu_custom_call.1} parent=1 // pred_check
      _
    $region11: #{tpu_custom_call.1} parent=1 // pred_check_branch
      %34 = sbr.rel (0) target = $region13
    $region12: #{tpu_custom_call.1} parent=1 // pred_region
      %35 = dma.done [#allocation3], 256
    $region13: #{tpu_custom_call.1} parent=1 // pred_fallthru
      _
    // Predicated region
    $region14: #{tpu_custom_call.1} parent=1 // pred_check
      _
    $region15: #{tpu_custom_call.1} parent=1 // pred_check_branch
      %37 = sbr.rel (0) target = $region17
    $region16: #{tpu_custom_call.1} parent=1 // pred_region
      %38 = dma.done [#allocation5], 256
    $region17: #{tpu_custom_call.1} parent=1 // pred_fallthru
      _
    %v39 = vld [vmem:[#allocation2] sm:$0xff]
    %v40 = vld [vmem:[#allocation2 + $0x8] sm:$0xff]
    %v41 = vld [vmem:[#allocation4] sm:$0xff]
    %v42 = vld [vmem:[#allocation4 + $0x8] sm:$0xff]
    %v43 = vmul.f32 %v39, %v39
    %v44 = vmul.f32 %v40, %v40
    %vm45 = vcmask 261120
    %v46 = vsel %vm45, %v43, 0.0
    %47 = vadd.xlane.f32.xlu0 %v46
    %v48 = vpop.xlane.xlu0 %47
    %v49 = vsel %vm45, %v44, 0.0
    %50 = vadd.xlane.f32.xlu0 %v49
    %v51 = vpop.xlane.xlu0 %50
    %v52 = vrsqrt.pop %v48
    %v53 = vmul.f32 %v48, %v52
    %vm54 = vcmp.eq.f32.partialorder %v48, inf
    %v55 = vsel %vm54, %v48, %v53
    %vm56 = vcmp.eq.f32.partialorder %v48, 0.0
    %v57 = vand.u32 %v48, 2147483648
    %v58 = vsel %vm56, %v57, %v55
    %v59 = vrsqrt.pop %v51
    %v60 = vmul.f32 %v51, %v59
    %vm61 = vcmp.eq.f32.partialorder %v51, inf
    %v62 = vsel %vm61, %v51, %v60
    %vm63 = vcmp.eq.f32.partialorder %v51, 0.0
    %v64 = vand.u32 %v51, 2147483648
    %v65 = vsel %vm63, %v64, %v62
    %v66 = vmul.f32 %v41, %v41
    %v67 = vmul.f32 %v42, %v42
    %v68 = vsel %vm45, %v66, 0.0
    %69 = vadd.xlane.f32.xlu0 %v68
    %v70 = vpop.xlane.xlu0 %69
    %v71 = vsel %vm45, %v67, 0.0
    %72 = vadd.xlane.f32.xlu0 %v71
    %v73 = vpop.xlane.xlu0 %72
    %v74 = vrsqrt.pop %v70
    %v75 = vmul.f32 %v70, %v74
    %vm76 = vcmp.eq.f32.partialorder %v70, inf
    %v77 = vsel %vm76, %v70, %v75
    %vm78 = vcmp.eq.f32.partialorder %v70, 0.0
    %v79 = vand.u32 %v70, 2147483648
    %v80 = vsel %vm78, %v79, %v77
    %v81 = vrsqrt.pop %v73
    %v82 = vmul.f32 %v73, %v81
    %vm83 = vcmp.eq.f32.partialorder %v73, inf
    %v84 = vsel %vm83, %v73, %v82
    %vm85 = vcmp.eq.f32.partialorder %v73, 0.0
    %v86 = vand.u32 %v73, 2147483648
    %v87 = vsel %vm85, %v86, %v84
    %v88 = vmax.f32 %v58, 1e-08
    %v89 = vmax.f32 %v65, 1e-08
    %v90 = vrcp.pop %v88
    %v91 = vmul.f32 %v39, %v90
    %v92 = vrcp.pop %v89
    %v93 = vmul.f32 %v40, %v92
    %v94 = vmax.f32 %v80, 1e-08
    %v95 = vmax.f32 %v87, 1e-08
    %v96 = vrcp.pop %v94
    %v97 = vmul.f32 %v41, %v96
    %v98 = vrcp.pop %v95
    %v99 = vmul.f32 %v42, %v98
    %v101 = vsel %vm45, %v91, 0
    %v104 = vsel %vm45, %v93, 0
    %v107 = vsel %vm45, %v97, 0
    %v110 = vsel %vm45, %v99, 0
    %112 = vmatprep.subr.mxu0 0.0
    %113 = vmatpush1.xpose.msra.mxu0 0.0
    %114 = vmatprep.subr.mxu0 0.0
    %115 = vmatpush1.xpose.msra.mxu0 0.0
    %116 = vmatprep.subr.mxu0 0.0
    %117 = vmatpush1.xpose.msra.mxu0 0.0
    %118 = vmatprep.subr.mxu0 0.0
    %119 = vmatpush1.xpose.msra.mxu0 0.0
    %120 = vmatprep.subr.mxu0 0.0
    %121 = vmatpush1.xpose.msra.mxu0 0.0
    %122 = vmatprep.subr.mxu0 0.0
    %123 = vmatpush1.xpose.msra.mxu0 0.0
    %124 = vmatprep.subr.mxu0 0.0
    %125 = vmatpush1.xpose.msra.mxu0 0.0
    %126 = vmatprep.subr.mxu0 0.0
    %127 = vmatpush1.xpose.msra.mxu0 0.0
    %128 = vmatprep.subr.mxu0 0.0
    %129 = vmatpush1.xpose.msra.mxu0 0.0
    %130 = vmatprep.subr.mxu0 0.0
    %131 = vmatpush1.xpose.msra.mxu0 0.0
    %132 = vmatprep.subr.mxu0 0.0
    %133 = vmatpush1.xpose.msra.mxu0 0.0
    %134 = vmatprep.subr.mxu0 0.0
    %135 = vmatpush1.xpose.msra.mxu0 0.0
    %136 = vmatprep.subr.mxu0 0.0
    %137 = vmatpush1.xpose.msra.mxu0 0.0
    %138 = vmatprep.subr.mxu0 0.0
    %139 = vmatpush1.xpose.msra.mxu0 0.0
    %140 = vmatprep.subr.mxu0 0.0
    %141 = vmatpush1.xpose.msra.mxu0 %v110
    %142 = vmatprep.subr.mxu0 0.0
    %143 = vmatpush1.xpose.msra.mxu0 %v107
    %144 = vmatprep.subr.mxu0 0.0
    %145 = vmatpush2.xpose.msra.mxu0 0.0
    %146 = vmatprep.subr.mxu0 0.0
    %147 = vmatpush2.xpose.msra.mxu0 0.0
    %148 = vmatprep.subr.mxu0 0.0
    %149 = vmatpush2.xpose.msra.mxu0 0.0
    %150 = vmatprep.subr.mxu0 0.0
    %151 = vmatpush2.xpose.msra.mxu0 0.0
    %152 = vmatprep.subr.mxu0 0.0
    %153 = vmatpush2.xpose.msra.mxu0 0.0
    %154 = vmatprep.subr.mxu0 0.0
    %155 = vmatpush2.xpose.msra.mxu0 0.0
    %156 = vmatprep.subr.mxu0 0.0
    %157 = vmatpush2.xpose.msra.mxu0 0.0
    %158 = vmatprep.subr.mxu0 0.0
    %159 = vmatpush2.xpose.msra.mxu0 0.0
    %160 = vmatprep.subr.mxu0 0.0
    %161 = vmatpush2.xpose.msra.mxu0 0.0
    %162 = vmatprep.subr.mxu0 0.0
    %163 = vmatpush2.xpose.msra.mxu0 0.0
    %164 = vmatprep.subr.mxu0 0.0
    %165 = vmatpush2.xpose.msra.mxu0 0.0
    %166 = vmatprep.subr.mxu0 0.0
    %167 = vmatpush2.xpose.msra.mxu0 0.0
    %168 = vmatprep.subr.mxu0 0.0
    %169 = vmatpush2.xpose.msra.mxu0 0.0
    %170 = vmatprep.subr.mxu0 0.0
    %171 = vmatpush2.xpose.msra.mxu0 0.0
    %172 = vmatprep.subr.mxu0 0.0
    %173 = vmatpush2.xpose.msra.mxu0 0.0
    %174 = vmatprep.subr.mxu0 0.0
    %175 = vmatpush2.xpose.msra.mxu0 0.0
    %176 = vmatprep.mubr.f32.mxu0 0.0
    %177 = vmatmul.mubr.f32.gmra.mxu0 %v101
    %v178 = vpop.f32.mrf.mxu0
    %v179 = vadd.f32 0.0, %v178
    %v180 = vpop.f32.mrf.mxu0
    %181 = vmatprep.mubr.f32.mxu0 0.0
    %182 = vmatmul.mubr.f32.gmra.mxu0 %v104
    %v183 = vpop.f32.mrf.mxu0
    %v184 = vadd.f32 0.0, %v183
    %v185 = vpop.f32.mrf.mxu0
    %186 = vdwg.mxu0
    %v187 = vrcp.pop 0.5
    %v188 = vmul.f32 %v179, %v187
    %v189 = vmul.f32 %v184, %v187
    %s190 = smul.u32 0, 16
    %v191 = vlaneseq
    %v192 = vshrl.u32 %v191, 7
    %v193 = vadd.s32 %v192, 8
    %v194 = vstv %s190
    %v195 = vadd.s32 %v194, %v192
    %v196 = vadd.s32 %v194, %v193
    %v197 = vlaneseq
    %v198 = vand.u32 %v197, 127
    %vm199 = vcmp.lt.s32.totalorder %v195, 8
    %vm200 = vcmp.lt.s32.totalorder %v196, 8
    %v201 = vadd.s32 %v195, 8
    %v202 = vadd.s32 %v196, 8
    %v203 = vsub.s32 %v195, 8
    %v204 = vsub.s32 %v196, 8
    %v205 = vsel %vm199, %v201, %v203
    %v206 = vsel %vm200, %v202, %v204
    %vm207 = vcmp.eq.s32.totalorder %v198, %v205
    %vm208 = vcmp.eq.s32.totalorder %v198, %v206
    %v209 = vsel %vm207, %v188, 0.0
    %v210 = vsel %vm208, %v189, 0.0
    %vm211 = vcmask 130048
    %v212 = vsel %vm211, %v209, 0.0
    %213 = vadd.xlane.f32.xlu0 %v212
    %v214 = vpop.xlane.xlu0 %213
    %v215 = vsel %vm211, %v210, 0.0
    %216 = vadd.xlane.f32.xlu0 %v215
    %v217 = vpop.xlane.xlu0 %216
    %vm218 = vcmp.eq.s32.totalorder %v198, %v195
    %vm219 = vcmp.eq.s32.totalorder %v198, %v196
    %v220 = vsel %vm218, -1e+30, %v188
    %v221 = vsel %vm219, -1e+30, %v189
    %v222 = vsel %vm211, %v220, -inf
    %223 = vmax.xlane.f32.xlu0 %v222
    %v224 = vpop.xlane.xlu0 %223
    %v225 = vsel %vm211, %v221, -inf
    %226 = vmax.xlane.f32.xlu0 %v225
    %v227 = vpop.xlane.xlu0 %226
    %v228 = vsub.f32 %v220, %v224
    %v229 = vsub.f32 %v221, %v227
    %v230 = vmul.f32 %v228, 1.442695
    %v231 = vpow.pop %v230
    %v232 = vmul.f32 %v229, 1.442695
    %v233 = vpow.pop %v232
    %v234 = vsel %vm211, %v231, 0.0
    %235 = vadd.xlane.f32.xlu0 %v234
    %v236 = vpop.xlane.xlu0 %235
    %v237 = vsel %vm211, %v233, 0.0
    %238 = vadd.xlane.f32.xlu0 %v237
    %v239 = vpop.xlane.xlu0 %238
    %v240 = vlog2.pop %v236
    %v241 = vmul.f32 %v240, 0.6931472
    %v242 = vlog2.pop %v239
    %v243 = vmul.f32 %v242, 0.6931472
    %v244 = vadd.f32 %v224, %v241
    %v245 = vadd.f32 %v227, %v243
    %v246 = vsub.f32 %v244, %v214
    %v247 = vsub.f32 %v245, %v217
    %vm248 = vcmask 7168
    %249 = vst.msk [vmem:[%s2] sm:$0xff] %vm248, %v246
    %250 = vst.msk [vmem:[%s2 + $0x8] sm:$0xff] %vm248, %v247
    // Predicated region
    $region18: #{tpu_custom_call.1} parent=1 // pred_check
      _
    $region19: #{tpu_custom_call.1} parent=1 // pred_check_branch
      %252 = sbr.rel (0) target = $region21
    $region20: #{tpu_custom_call.1} parent=1 // pred_region
      _
    $region21: #{tpu_custom_call.1} parent=1 // pred_fallthru
      _
    // Predicated region
    $region22: #{tpu_custom_call.1} parent=1 // pred_check
      _
    $region23: #{tpu_custom_call.1} parent=1 // pred_check_branch
      %254 = sbr.rel (0) target = $region25
    $region24: #{tpu_custom_call.1} parent=1 // pred_region
      _
    $region25: #{tpu_custom_call.1} parent=1 // pred_fallthru
      _
    %255 = vsyncpa [#allocation3], 1
    %256 = vsyncpa [#allocation5], 1

</llo_original>
